<compile_context>
chip_gen: v5e
topology: v5e:2x2
jax: 0.10.0
libtpu: 0.0.40
codegen_flags: <defaults>
</compile_context>

<pallas_src>
import jax
import jax.numpy as jnp
from jax.experimental import pallas as pl
from jax.experimental.pallas import tpu as pltpu  # noqa: F401  (TPU backend)


def _full_vmem_spec(shape):
    n = len(shape)
    return pl.BlockSpec(shape, lambda: (0,) * n)


# ----------------------------------------------------------------------------
# Fused kernel: person_linear + LSTM over time + tanh-attention pooling
# ----------------------------------------------------------------------------
def _fused_kernel(xnd_ref, person_ref,
                  pw_ref, pb_ref,
                  wih_xnt_ref, wih_p_ref,
                  whh_ref, b_ref, watt_ref,
                  o_ref):
    """Shapes (time-major, batch padded to Bp):
      xnd_ref      : (T*Bp, 2*NF+1)  [lab features | not-nan mask | dt], row = t*Bp + b
      person_ref   : (Bp, P)
      pw_ref, pb_ref: (P, 6), (1, 6)            person_linear
      wih_xnt_ref  : (2*NF+1, 4H)   W_ih rows for [input | nnan | dt]
      wih_p_ref    : (6, 4H)        W_ih rows for person_feature
      whh_ref      : (H, 4H)
      b_ref        : (1, 4H)        (for real PyTorch weights: b_ih + b_hh)
      watt_ref     : (1, H)         attention vector
      o_ref        : (Bp, H)        pooled output
    Gate order i, f, g, o (PyTorch nn.LSTM).
    """
    f32 = jnp.float32
    TB = xnd_ref.shape[0]
    Bp, H = o_ref.shape
    T = TB // Bp
    G = 4 * H

    # ---- person_linear, folded into a per-batch gate bias (time-invariant) ----
    pf = jnp.dot(person_ref[...], pw_ref[...],
                 preferred_element_type=f32) + pb_ref[...]                  # (Bp, 6)
    bias_eff = jnp.dot(pf, wih_p_ref[...],
                       preferred_element_type=f32) + b_ref[...]             # (Bp, 4H)

    # ---- input projection hoisted out of the recurrence: ONE big matmul ----
    gx = jnp.dot(xnd_ref[...].astype(jnp.bfloat16),
                 wih_xnt_ref[...].astype(jnp.bfloat16),
                 preferred_element_type=f32)                                # (T*Bp, 4H)
    gates_pre = gx.reshape(T, Bp, G) + bias_eff[None]                       # (T, Bp, 4H)

    # ---- LSTM recurrence: fully unrolled, h/c stay in vregs (never hit HBM) ----
    whh_bf = whh_ref[...].astype(jnp.bfloat16)
    lane = jax.lax.broadcasted_iota(jnp.int32, (Bp, G), 1)                  # hoisted
    g_mask = (lane >= 2 * H) & (lane < 3 * H)   # tanh for 'g' gate, sigmoid else

    h = jnp.zeros((Bp, H), f32)
    c = jnp.zeros((Bp, H), f32)
    hs = []
    for t in range(T):
        gates = gates_pre[t] + jnp.dot(h.astype(jnp.bfloat16), whh_bf,
                                       preferred_element_type=f32)          # (Bp, 4H)
        # one sigmoid + one tanh on the full 128-lane vreg, combined by lane mask
        acts = jnp.where(g_mask, jnp.tanh(gates), jax.nn.sigmoid(gates))
        i_g = acts[:, 0:H]
        f_g = acts[:, H:2 * H]
        g_g = acts[:, 2 * H:3 * H]
        o_g = acts[:, 3 * H:]
        c = f_g * c + i_g * g_g
        h = o_g * jnp.tanh(c)
        hs.append(h)

    hs3 = jnp.stack(hs, axis=0)                                             # (T, Bp, H)

    # ---- tanh-attention pooling over time (all in VMEM) ----
    w_a = watt_ref[...]                                                     # (1, H)
    s = jnp.tanh(jnp.sum(hs3 * w_a[None, :, :], axis=-1, keepdims=True))    # (T, Bp, 1)
    s = s - jnp.max(s, axis=0, keepdims=True)
    e = jnp.exp(s)
    p = e * pl.reciprocal(jnp.sum(e, axis=0, keepdims=True), approx=True)   # softmax(T)
    o_ref[...] = jnp.sum(p * hs3, axis=0)                                   # (Bp, H)


# ----------------------------------------------------------------------------
# Wrapper: layout prep (f32 cast, batch pad to 8, time-major flatten, concat
# fusion so the kernel does a single input matmul) + ONE pallas_call
# ----------------------------------------------------------------------------
@jax.jit
def ts_feature_extractor_forward(params, input_batch, hgb_delta,
                                 test_time_delta, person_info, nnan_mask):
    del hgb_delta  # TODO(synk): unused — LSTM_Attention_model internals unknown.
    B, T, NF = input_batch.shape
    PO = 6
    H = params["w_hh"].shape[0]
    P = person_info.shape[1]
    F_IN = 2 * NF + 1

    # Pad batch to a multiple of 8 so every vreg sublane is used.
    Bp = ((B + 7) // 8) * 8
    pad = Bp - B

    def prep(x):
        x = x.astype(jnp.float32)
        if pad:
            x = jnp.pad(x, ((0, pad),) + ((0, 0),) * (x.ndim - 1))
        return x

    # Fuse the [input | nnan | dt] concat here; time-major flatten so rows are
    # grouped by timestep (row = t*Bp + b).
    xnd = jnp.concatenate([prep(input_batch), prep(nnan_mask),
                           prep(test_time_delta)], axis=-1)                 # (Bp, T, F_IN)
    xnd = jnp.transpose(xnd, (1, 0, 2)).reshape(T * Bp, F_IN)
    person = prep(person_info)                                              # (Bp, P)

    # Split W_ih rows by encoder-input concat order:
    # [input_batch (NF) | nnan_mask (NF) | person_feature (6) | test_time_delta (1)]
    w_ih = params["w_ih"]
    wih_xnt = jnp.concatenate([w_ih[0:2 * NF],
                               w_ih[2 * NF + PO:2 * NF + PO + 1]], axis=0)  # (F_IN, 4H)
    wih_p = w_ih[2 * NF:2 * NF + PO]                                        # (PO, 4H)

    out = pl.pallas_call(
        _fused_kernel,
        out_shape=jax.ShapeDtypeStruct((Bp, H), jnp.float32),
        in_specs=[
            _full_vmem_spec((T * Bp, F_IN)),    # xnd
            _full_vmem_spec((Bp, P)),           # person
            _full_vmem_spec((P, PO)),           # pw
            _full_vmem_spec((1, PO)),           # pb
            _full_vmem_spec((F_IN, 4 * H)),     # w_ih[input|nnan|dt]
            _full_vmem_spec((PO, 4 * H)),       # w_ih[person]
            _full_vmem_spec((H, 4 * H)),        # w_hh
            _full_vmem_spec((1, 4 * H)),        # b_lstm
            _full_vmem_spec((1, H)),            # w_att
        ],
        out_specs=_full_vmem_spec((Bp, H)),
    )(xnd, person,
      params["pw"], params["pb"].reshape(1, PO),
      wih_xnt, wih_p,
      params["w_hh"], params["b_lstm"].reshape(1, 4 * H),
      params["w_att"].reshape(1, H))

    return out[:B]


# ----------------------------------------------------------------------------
# Pure-JAX reference of the same (assumed) architecture, f32 throughout
# ----------------------------------------------------------------------------
def reference_forward(params, input_batch, test_time_delta, person_info, nnan_mask):
    B, T, NF = input_batch.shape
    H = params["w_hh"].shape[0]
    pf = person_info.astype(jnp.float32) @ params["pw"] + params["pb"]      # (B, 6)
    pf_t = jnp.broadcast_to(pf[None], (T, B, 6))
    x = jnp.concatenate([
        jnp.transpose(input_batch, (1, 0, 2)).astype(jnp.float32),
        jnp.transpose(nnan_mask, (1, 0, 2)).astype(jnp.float32),
        pf_t,
        jnp.transpose(test_time_delta, (1, 0, 2)).astype(jnp.float32),
    ], axis=-1)                                                             # (T, B, F)

    def step(carry, xt):
        h, c = carry
        gates = xt @ params["w_ih"] + h @ params["w_hh"] + params["b_lstm"]
        i = jax.nn.sigmoid(gates[:, :H])
        f = jax.nn.sigmoid(gates[:, H:2 * H])
        g = jnp.tanh(gates[:, 2 * H:3 * H])
        o = jax.nn.sigmoid(gates[:, 3 * H:])
        c = f * c + i * g
        h = o * jnp.tanh(c)
        return (h, c), h

    init = (jnp.zeros((B, H), jnp.float32), jnp.zeros((B, H), jnp.float32))
    _, hs = jax.lax.scan(step, init, x)                                     # (T, B, H)
    s = jnp.tanh(jnp.sum(hs * params["w_att"][None, None, :], axis=-1))     # (T, B)
    p = jax.nn.softmax(s, axis=0)
    return jnp.sum(p[:, :, None] * hs, axis=0)                              # (B, H)


def init_params(key, person_input_dim, num_feature, embedding_size):
    person_output_dim = 6
    input_size = num_feature * 2 + person_output_dim + 1
    H = embedding_size
    k = jax.random.split(key, 6)
    s = 0.1
    return {
        "pw": s * jax.random.normal(k[0], (person_input_dim, person_output_dim),
                                    jnp.float32),
        "pb": s * jax.random.normal(k[1], (person_output_dim,), jnp.float32),
        "w_ih": s * jax.random.normal(k[2], (input_size, 4 * H), jnp.float32),
        "w_hh": s * jax.random.normal(k[3], (H, 4 * H), jnp.float32),
        "b_lstm": s * jax.random.normal(k[4], (4 * H,), jnp.float32),
        "w_att": s * jax.random.normal(k[5], (H,), jnp.float32),
    }


if __name__ == "__main__":
    # Small shapes implied by the module:
    B = 2                 # batch
    T = 8                 # len_time - 1
    num_feature = 8       # test_num
    person_input_dim = 5  # person_feature_dim
    embedding_size = 32

    key = jax.random.PRNGKey(0)
    kp, k1, k2, k3, k4, k5 = jax.random.split(key, 6)

    params = init_params(kp, person_input_dim, num_feature, embedding_size)

    input_batch = jax.random.normal(k1, (B, T, num_feature), jnp.float32)
    hgb_delta = jax.random.normal(k2, (B, T, 1), jnp.float32)
    test_time_delta = jax.random.normal(k3, (B, T, 1), jnp.float32)
    person_info = jax.random.normal(k4, (B, person_input_dim), jnp.float32)
    nnan_mask = (jax.random.uniform(k5, (B, T, num_feature)) > 0.2).astype(
        jnp.float32)

    out = ts_feature_extractor_forward(params, input_batch, hgb_delta,
                                       test_time_delta, person_info, nnan_mask)
    out = jax.block_until_ready(out)
    assert out.shape == (B, embedding_size), out.shape
    assert bool(jnp.all(jnp.isfinite(out)))

    # Correctness vs. an f32 pure-JAX reference (kernel uses bf16 MXU operands,
    # so allow a small tolerance).
    ref = reference_forward(params, input_batch, test_time_delta, person_info,
                            nnan_mask)
    max_diff = float(jnp.max(jnp.abs(out - ref)))
    assert max_diff < 2e-2, f"max |kernel - ref| = {max_diff}"

    print("KERNEL_OK")
</pallas_src>

<mosaic_0001>
module attributes {stable_mosaic.version = 11 : i64} {
  func.func @_fused_kernel(%arg0: memref<64x17xf32, #tpu.memory_space<vmem>>, %arg1: memref<8x5xf32, #tpu.memory_space<vmem>>, %arg2: memref<5x6xf32, #tpu.memory_space<vmem>>, %arg3: memref<1x6xf32, #tpu.memory_space<vmem>>, %arg4: memref<17x128xf32, #tpu.memory_space<vmem>>, %arg5: memref<6x128xf32, #tpu.memory_space<vmem>>, %arg6: memref<32x128xf32, #tpu.memory_space<vmem>>, %arg7: memref<1x128xf32, #tpu.memory_space<vmem>>, %arg8: memref<1x32xf32, #tpu.memory_space<vmem>>, %arg9: memref<8x32xf32, #tpu.memory_space<vmem>>) attributes {dimension_semantics = [], scalar_prefetch = 0 : i64, scratch_operands = 0 : i64, tpu.core_type = #tpu.core_type<tc>} {
    %c0 = arith.constant 0 : index
    %c0_0 = arith.constant 0 : index
    %0 = vector.load %arg1[%c0, %c0_0] : memref<8x5xf32, #tpu.memory_space<vmem>>, vector<8x5xf32>
    %c0_1 = arith.constant 0 : index
    %c0_2 = arith.constant 0 : index
    %1 = vector.load %arg2[%c0_1, %c0_2] : memref<5x6xf32, #tpu.memory_space<vmem>>, vector<5x6xf32>
    %cst = arith.constant dense<0.000000e+00> : vector<8x6xf32>
    %2 = tpu.matmul %0, %1, %cst {dimension_numbers = #tpu.dot_dimension_numbers<[1], [0], [0], [1], [0, 0, 1, 1], [], []>} : vector<8x5xf32>, vector<5x6xf32>, vector<8x6xf32> -> vector<8x6xf32>
    %c0_3 = arith.constant 0 : index
    %c0_4 = arith.constant 0 : index
    %3 = vector.load %arg3[%c0_3, %c0_4] : memref<1x6xf32, #tpu.memory_space<vmem>>, vector<1x6xf32>
    %4 = vector.broadcast %3 : vector<1x6xf32> to vector<8x6xf32>
    %5 = arith.addf %2, %4 : vector<8x6xf32>
    %c0_5 = arith.constant 0 : index
    %c0_6 = arith.constant 0 : index
    %6 = vector.load %arg5[%c0_5, %c0_6] : memref<6x128xf32, #tpu.memory_space<vmem>>, vector<6x128xf32>
    %cst_7 = arith.constant dense<0.000000e+00> : vector<8x128xf32>
    %7 = tpu.matmul %5, %6, %cst_7 {dimension_numbers = #tpu.dot_dimension_numbers<[1], [0], [0], [1], [0, 0, 1, 1], [], []>} : vector<8x6xf32>, vector<6x128xf32>, vector<8x128xf32> -> vector<8x128xf32>
    %c0_8 = arith.constant 0 : index
    %c0_9 = arith.constant 0 : index
    %8 = vector.load %arg7[%c0_8, %c0_9] : memref<1x128xf32, #tpu.memory_space<vmem>>, vector<1x128xf32>
    %9 = vector.broadcast %8 : vector<1x128xf32> to vector<8x128xf32>
    %10 = arith.addf %7, %9 : vector<8x128xf32>
    %c0_10 = arith.constant 0 : index
    %c0_11 = arith.constant 0 : index
    %11 = vector.load %arg0[%c0_10, %c0_11] : memref<64x17xf32, #tpu.memory_space<vmem>>, vector<64x17xf32>
    %12 = arith.truncf %11 : vector<64x17xf32> to vector<64x17xbf16>
    %c0_12 = arith.constant 0 : index
    %c0_13 = arith.constant 0 : index
    %13 = vector.load %arg4[%c0_12, %c0_13] : memref<17x128xf32, #tpu.memory_space<vmem>>, vector<17x128xf32>
    %14 = arith.truncf %13 : vector<17x128xf32> to vector<17x128xbf16>
    %cst_14 = arith.constant dense<0.000000e+00> : vector<64x128xf32>
    %15 = tpu.matmul %12, %14, %cst_14 {dimension_numbers = #tpu.dot_dimension_numbers<[1], [0], [0], [1], [0, 0, 1, 1], [], []>} : vector<64x17xbf16>, vector<17x128xbf16>, vector<64x128xf32> -> vector<64x128xf32>
    %16 = vector.shape_cast %15 : vector<64x128xf32> to vector<8x8x128xf32>
    %17 = vector.shape_cast %10 : vector<8x128xf32> to vector<1x8x128xf32>
    %18 = vector.broadcast %17 : vector<1x8x128xf32> to vector<8x8x128xf32>
    %19 = arith.addf %16, %18 : vector<8x8x128xf32>
    %c0_15 = arith.constant 0 : index
    %c0_16 = arith.constant 0 : index
    %20 = vector.load %arg6[%c0_15, %c0_16] : memref<32x128xf32, #tpu.memory_space<vmem>>, vector<32x128xf32>
    %21 = arith.truncf %20 : vector<32x128xf32> to vector<32x128xbf16>
    %22 = tpu.iota {dimensions = array<i32: 1>} : vector<8x128xi32>
    %c64_i32 = arith.constant 64 : i32
    %23 = vector.broadcast %c64_i32 : i32 to vector<8x128xi32>
    %24 = arith.cmpi sge, %22, %23 : vector<8x128xi32>
    %c96_i32 = arith.constant 96 : i32
    %25 = vector.broadcast %c96_i32 : i32 to vector<8x128xi32>
    %26 = arith.cmpi slt, %22, %25 : vector<8x128xi32>
    %27 = arith.andi %24, %26 : vector<8x128xi1>
    %cst_17 = arith.constant 0.000000e+00 : f32
    %28 = vector.broadcast %cst_17 : f32 to vector<8x32xf32>
    %cst_18 = arith.constant 0.000000e+00 : f32
    %29 = vector.broadcast %cst_18 : f32 to vector<8x32xf32>
    %30 = vector.extract_strided_slice %19 {offsets = [0, 0, 0], sizes = [1, 8, 128], strides = [1, 1, 1]} : vector<8x8x128xf32> to vector<1x8x128xf32>
    %31 = vector.shape_cast %30 : vector<1x8x128xf32> to vector<8x128xf32>
    %32 = arith.truncf %28 : vector<8x32xf32> to vector<8x32xbf16>
    %cst_19 = arith.constant dense<0.000000e+00> : vector<8x128xf32>
    %33 = tpu.matmul %32, %21, %cst_19 {dimension_numbers = #tpu.dot_dimension_numbers<[1], [0], [0], [1], [0, 0, 1, 1], [], []>} : vector<8x32xbf16>, vector<32x128xbf16>, vector<8x128xf32> -> vector<8x128xf32>
    %34 = arith.addf %31, %33 : vector<8x128xf32>
    %35 = math.tanh %34 : vector<8x128xf32>
    %36 = arith.negf %34 : vector<8x128xf32>
    %37 = math.exp %36 : vector<8x128xf32>
    %cst_20 = arith.constant 1.000000e+00 : f32
    %38 = vector.broadcast %cst_20 : f32 to vector<8x128xf32>
    %39 = arith.addf %38, %37 : vector<8x128xf32>
    %40 = arith.divf %38, %39 : vector<8x128xf32>
    %41 = arith.select %27, %35, %40 : vector<8x128xi1>, vector<8x128xf32>
    %42 = vector.extract_strided_slice %41 {offsets = [0, 0], sizes = [8, 32], strides = [1, 1]} : vector<8x128xf32> to vector<8x32xf32>
    %43 = vector.extract_strided_slice %41 {offsets = [0, 32], sizes = [8, 32], strides = [1, 1]} : vector<8x128xf32> to vector<8x32xf32>
    %44 = vector.extract_strided_slice %41 {offsets = [0, 64], sizes = [8, 32], strides = [1, 1]} : vector<8x128xf32> to vector<8x32xf32>
    %45 = vector.extract_strided_slice %41 {offsets = [0, 96], sizes = [8, 32], strides = [1, 1]} : vector<8x128xf32> to vector<8x32xf32>
    %46 = arith.mulf %43, %29 : vector<8x32xf32>
    %47 = arith.mulf %42, %44 : vector<8x32xf32>
    %48 = arith.addf %46, %47 : vector<8x32xf32>
    %49 = math.tanh %48 : vector<8x32xf32>
    %50 = arith.mulf %45, %49 : vector<8x32xf32>
    %51 = vector.extract_strided_slice %19 {offsets = [1, 0, 0], sizes = [1, 8, 128], strides = [1, 1, 1]} : vector<8x8x128xf32> to vector<1x8x128xf32>
    %52 = vector.shape_cast %51 : vector<1x8x128xf32> to vector<8x128xf32>
    %53 = arith.truncf %50 : vector<8x32xf32> to vector<8x32xbf16>
    %cst_21 = arith.constant dense<0.000000e+00> : vector<8x128xf32>
    %54 = tpu.matmul %53, %21, %cst_21 {dimension_numbers = #tpu.dot_dimension_numbers<[1], [0], [0], [1], [0, 0, 1, 1], [], []>} : vector<8x32xbf16>, vector<32x128xbf16>, vector<8x128xf32> -> vector<8x128xf32>
    %55 = arith.addf %52, %54 : vector<8x128xf32>
    %56 = math.tanh %55 : vector<8x128xf32>
    %57 = arith.negf %55 : vector<8x128xf32>
    %58 = math.exp %57 : vector<8x128xf32>
    %cst_22 = arith.constant 1.000000e+00 : f32
    %59 = vector.broadcast %cst_22 : f32 to vector<8x128xf32>
    %60 = arith.addf %59, %58 : vector<8x128xf32>
    %61 = arith.divf %59, %60 : vector<8x128xf32>
    %62 = arith.select %27, %56, %61 : vector<8x128xi1>, vector<8x128xf32>
    %63 = vector.extract_strided_slice %62 {offsets = [0, 0], sizes = [8, 32], strides = [1, 1]} : vector<8x128xf32> to vector<8x32xf32>
    %64 = vector.extract_strided_slice %62 {offsets = [0, 32], sizes = [8, 32], strides = [1, 1]} : vector<8x128xf32> to vector<8x32xf32>
    %65 = vector.extract_strided_slice %62 {offsets = [0, 64], sizes = [8, 32], strides = [1, 1]} : vector<8x128xf32> to vector<8x32xf32>
    %66 = vector.extract_strided_slice %62 {offsets = [0, 96], sizes = [8, 32], strides = [1, 1]} : vector<8x128xf32> to vector<8x32xf32>
    %67 = arith.mulf %64, %48 : vector<8x32xf32>
    %68 = arith.mulf %63, %65 : vector<8x32xf32>
    %69 = arith.addf %67, %68 : vector<8x32xf32>
    %70 = math.tanh %69 : vector<8x32xf32>
    %71 = arith.mulf %66, %70 : vector<8x32xf32>
    %72 = vector.extract_strided_slice %19 {offsets = [2, 0, 0], sizes = [1, 8, 128], strides = [1, 1, 1]} : vector<8x8x128xf32> to vector<1x8x128xf32>
    %73 = vector.shape_cast %72 : vector<1x8x128xf32> to vector<8x128xf32>
    %74 = arith.truncf %71 : vector<8x32xf32> to vector<8x32xbf16>
    %cst_23 = arith.constant dense<0.000000e+00> : vector<8x128xf32>
    %75 = tpu.matmul %74, %21, %cst_23 {dimension_numbers = #tpu.dot_dimension_numbers<[1], [0], [0], [1], [0, 0, 1, 1], [], []>} : vector<8x32xbf16>, vector<32x128xbf16>, vector<8x128xf32> -> vector<8x128xf32>
    %76 = arith.addf %73, %75 : vector<8x128xf32>
    %77 = math.tanh %76 : vector<8x128xf32>
    %78 = arith.negf %76 : vector<8x128xf32>
    %79 = math.exp %78 : vector<8x128xf32>
    %cst_24 = arith.constant 1.000000e+00 : f32
    %80 = vector.broadcast %cst_24 : f32 to vector<8x128xf32>
    %81 = arith.addf %80, %79 : vector<8x128xf32>
    %82 = arith.divf %80, %81 : vector<8x128xf32>
    %83 = arith.select %27, %77, %82 : vector<8x128xi1>, vector<8x128xf32>
    %84 = vector.extract_strided_slice %83 {offsets = [0, 0], sizes = [8, 32], strides = [1, 1]} : vector<8x128xf32> to vector<8x32xf32>
    %85 = vector.extract_strided_slice %83 {offsets = [0, 32], sizes = [8, 32], strides = [1, 1]} : vector<8x128xf32> to vector<8x32xf32>
    %86 = vector.extract_strided_slice %83 {offsets = [0, 64], sizes = [8, 32], strides = [1, 1]} : vector<8x128xf32> to vector<8x32xf32>
    %87 = vector.extract_strided_slice %83 {offsets = [0, 96], sizes = [8, 32], strides = [1, 1]} : vector<8x128xf32> to vector<8x32xf32>
    %88 = arith.mulf %85, %69 : vector<8x32xf32>
    %89 = arith.mulf %84, %86 : vector<8x32xf32>
    %90 = arith.addf %88, %89 : vector<8x32xf32>
    %91 = math.tanh %90 : vector<8x32xf32>
    %92 = arith.mulf %87, %91 : vector<8x32xf32>
    %93 = vector.extract_strided_slice %19 {offsets = [3, 0, 0], sizes = [1, 8, 128], strides = [1, 1, 1]} : vector<8x8x128xf32> to vector<1x8x128xf32>
    %94 = vector.shape_cast %93 : vector<1x8x128xf32> to vector<8x128xf32>
    %95 = arith.truncf %92 : vector<8x32xf32> to vector<8x32xbf16>
    %cst_25 = arith.constant dense<0.000000e+00> : vector<8x128xf32>
    %96 = tpu.matmul %95, %21, %cst_25 {dimension_numbers = #tpu.dot_dimension_numbers<[1], [0], [0], [1], [0, 0, 1, 1], [], []>} : vector<8x32xbf16>, vector<32x128xbf16>, vector<8x128xf32> -> vector<8x128xf32>
    %97 = arith.addf %94, %96 : vector<8x128xf32>
    %98 = math.tanh %97 : vector<8x128xf32>
    %99 = arith.negf %97 : vector<8x128xf32>
    %100 = math.exp %99 : vector<8x128xf32>
    %cst_26 = arith.constant 1.000000e+00 : f32
    %101 = vector.broadcast %cst_26 : f32 to vector<8x128xf32>
    %102 = arith.addf %101, %100 : vector<8x128xf32>
    %103 = arith.divf %101, %102 : vector<8x128xf32>
    %104 = arith.select %27, %98, %103 : vector<8x128xi1>, vector<8x128xf32>
    %105 = vector.extract_strided_slice %104 {offsets = [0, 0], sizes = [8, 32], strides = [1, 1]} : vector<8x128xf32> to vector<8x32xf32>
    %106 = vector.extract_strided_slice %104 {offsets = [0, 32], sizes = [8, 32], strides = [1, 1]} : vector<8x128xf32> to vector<8x32xf32>
    %107 = vector.extract_strided_slice %104 {offsets = [0, 64], sizes = [8, 32], strides = [1, 1]} : vector<8x128xf32> to vector<8x32xf32>
    %108 = vector.extract_strided_slice %104 {offsets = [0, 96], sizes = [8, 32], strides = [1, 1]} : vector<8x128xf32> to vector<8x32xf32>
    %109 = arith.mulf %106, %90 : vector<8x32xf32>
    %110 = arith.mulf %105, %107 : vector<8x32xf32>
    %111 = arith.addf %109, %110 : vector<8x32xf32>
    %112 = math.tanh %111 : vector<8x32xf32>
    %113 = arith.mulf %108, %112 : vector<8x32xf32>
    %114 = vector.extract_strided_slice %19 {offsets = [4, 0, 0], sizes = [1, 8, 128], strides = [1, 1, 1]} : vector<8x8x128xf32> to vector<1x8x128xf32>
    %115 = vector.shape_cast %114 : vector<1x8x128xf32> to vector<8x128xf32>
    %116 = arith.truncf %113 : vector<8x32xf32> to vector<8x32xbf16>
    %cst_27 = arith.constant dense<0.000000e+00> : vector<8x128xf32>
    %117 = tpu.matmul %116, %21, %cst_27 {dimension_numbers = #tpu.dot_dimension_numbers<[1], [0], [0], [1], [0, 0, 1, 1], [], []>} : vector<8x32xbf16>, vector<32x128xbf16>, vector<8x128xf32> -> vector<8x128xf32>
    %118 = arith.addf %115, %117 : vector<8x128xf32>
    %119 = math.tanh %118 : vector<8x128xf32>
    %120 = arith.negf %118 : vector<8x128xf32>
    %121 = math.exp %120 : vector<8x128xf32>
    %cst_28 = arith.constant 1.000000e+00 : f32
    %122 = vector.broadcast %cst_28 : f32 to vector<8x128xf32>
    %123 = arith.addf %122, %121 : vector<8x128xf32>
    %124 = arith.divf %122, %123 : vector<8x128xf32>
    %125 = arith.select %27, %119, %124 : vector<8x128xi1>, vector<8x128xf32>
    %126 = vector.extract_strided_slice %125 {offsets = [0, 0], sizes = [8, 32], strides = [1, 1]} : vector<8x128xf32> to vector<8x32xf32>
    %127 = vector.extract_strided_slice %125 {offsets = [0, 32], sizes = [8, 32], strides = [1, 1]} : vector<8x128xf32> to vector<8x32xf32>
    %128 = vector.extract_strided_slice %125 {offsets = [0, 64], sizes = [8, 32], strides = [1, 1]} : vector<8x128xf32> to vector<8x32xf32>
    %129 = vector.extract_strided_slice %125 {offsets = [0, 96], sizes = [8, 32], strides = [1, 1]} : vector<8x128xf32> to vector<8x32xf32>
    %130 = arith.mulf %127, %111 : vector<8x32xf32>
    %131 = arith.mulf %126, %128 : vector<8x32xf32>
    %132 = arith.addf %130, %131 : vector<8x32xf32>
    %133 = math.tanh %132 : vector<8x32xf32>
    %134 = arith.mulf %129, %133 : vector<8x32xf32>
    %135 = vector.extract_strided_slice %19 {offsets = [5, 0, 0], sizes = [1, 8, 128], strides = [1, 1, 1]} : vector<8x8x128xf32> to vector<1x8x128xf32>
    %136 = vector.shape_cast %135 : vector<1x8x128xf32> to vector<8x128xf32>
    %137 = arith.truncf %134 : vector<8x32xf32> to vector<8x32xbf16>
    %cst_29 = arith.constant dense<0.000000e+00> : vector<8x128xf32>
    %138 = tpu.matmul %137, %21, %cst_29 {dimension_numbers = #tpu.dot_dimension_numbers<[1], [0], [0], [1], [0, 0, 1, 1], [], []>} : vector<8x32xbf16>, vector<32x128xbf16>, vector<8x128xf32> -> vector<8x128xf32>
    %139 = arith.addf %136, %138 : vector<8x128xf32>
    %140 = math.tanh %139 : vector<8x128xf32>
    %141 = arith.negf %139 : vector<8x128xf32>
    %142 = math.exp %141 : vector<8x128xf32>
    %cst_30 = arith.constant 1.000000e+00 : f32
    %143 = vector.broadcast %cst_30 : f32 to vector<8x128xf32>
    %144 = arith.addf %143, %142 : vector<8x128xf32>
    %145 = arith.divf %143, %144 : vector<8x128xf32>
    %146 = arith.select %27, %140, %145 : vector<8x128xi1>, vector<8x128xf32>
    %147 = vector.extract_strided_slice %146 {offsets = [0, 0], sizes = [8, 32], strides = [1, 1]} : vector<8x128xf32> to vector<8x32xf32>
    %148 = vector.extract_strided_slice %146 {offsets = [0, 32], sizes = [8, 32], strides = [1, 1]} : vector<8x128xf32> to vector<8x32xf32>
    %149 = vector.extract_strided_slice %146 {offsets = [0, 64], sizes = [8, 32], strides = [1, 1]} : vector<8x128xf32> to vector<8x32xf32>
    %150 = vector.extract_strided_slice %146 {offsets = [0, 96], sizes = [8, 32], strides = [1, 1]} : vector<8x128xf32> to vector<8x32xf32>
    %151 = arith.mulf %148, %132 : vector<8x32xf32>
    %152 = arith.mulf %147, %149 : vector<8x32xf32>
    %153 = arith.addf %151, %152 : vector<8x32xf32>
    %154 = math.tanh %153 : vector<8x32xf32>
    %155 = arith.mulf %150, %154 : vector<8x32xf32>
    %156 = vector.extract_strided_slice %19 {offsets = [6, 0, 0], sizes = [1, 8, 128], strides = [1, 1, 1]} : vector<8x8x128xf32> to vector<1x8x128xf32>
    %157 = vector.shape_cast %156 : vector<1x8x128xf32> to vector<8x128xf32>
    %158 = arith.truncf %155 : vector<8x32xf32> to vector<8x32xbf16>
    %cst_31 = arith.constant dense<0.000000e+00> : vector<8x128xf32>
    %159 = tpu.matmul %158, %21, %cst_31 {dimension_numbers = #tpu.dot_dimension_numbers<[1], [0], [0], [1], [0, 0, 1, 1], [], []>} : vector<8x32xbf16>, vector<32x128xbf16>, vector<8x128xf32> -> vector<8x128xf32>
    %160 = arith.addf %157, %159 : vector<8x128xf32>
    %161 = math.tanh %160 : vector<8x128xf32>
    %162 = arith.negf %160 : vector<8x128xf32>
    %163 = math.exp %162 : vector<8x128xf32>
    %cst_32 = arith.constant 1.000000e+00 : f32
    %164 = vector.broadcast %cst_32 : f32 to vector<8x128xf32>
    %165 = arith.addf %164, %163 : vector<8x128xf32>
    %166 = arith.divf %164, %165 : vector<8x128xf32>
    %167 = arith.select %27, %161, %166 : vector<8x128xi1>, vector<8x128xf32>
    %168 = vector.extract_strided_slice %167 {offsets = [0, 0], sizes = [8, 32], strides = [1, 1]} : vector<8x128xf32> to vector<8x32xf32>
    %169 = vector.extract_strided_slice %167 {offsets = [0, 32], sizes = [8, 32], strides = [1, 1]} : vector<8x128xf32> to vector<8x32xf32>
    %170 = vector.extract_strided_slice %167 {offsets = [0, 64], sizes = [8, 32], strides = [1, 1]} : vector<8x128xf32> to vector<8x32xf32>
    %171 = vector.extract_strided_slice %167 {offsets = [0, 96], sizes = [8, 32], strides = [1, 1]} : vector<8x128xf32> to vector<8x32xf32>
    %172 = arith.mulf %169, %153 : vector<8x32xf32>
    %173 = arith.mulf %168, %170 : vector<8x32xf32>
    %174 = arith.addf %172, %173 : vector<8x32xf32>
    %175 = math.tanh %174 : vector<8x32xf32>
    %176 = arith.mulf %171, %175 : vector<8x32xf32>
    %177 = vector.extract_strided_slice %19 {offsets = [7, 0, 0], sizes = [1, 8, 128], strides = [1, 1, 1]} : vector<8x8x128xf32> to vector<1x8x128xf32>
    %178 = vector.shape_cast %177 : vector<1x8x128xf32> to vector<8x128xf32>
    %179 = arith.truncf %176 : vector<8x32xf32> to vector<8x32xbf16>
    %cst_33 = arith.constant dense<0.000000e+00> : vector<8x128xf32>
    %180 = tpu.matmul %179, %21, %cst_33 {dimension_numbers = #tpu.dot_dimension_numbers<[1], [0], [0], [1], [0, 0, 1, 1], [], []>} : vector<8x32xbf16>, vector<32x128xbf16>, vector<8x128xf32> -> vector<8x128xf32>
    %181 = arith.addf %178, %180 : vector<8x128xf32>
    %182 = math.tanh %181 : vector<8x128xf32>
    %183 = arith.negf %181 : vector<8x128xf32>
    %184 = math.exp %183 : vector<8x128xf32>
    %cst_34 = arith.constant 1.000000e+00 : f32
    %185 = vector.broadcast %cst_34 : f32 to vector<8x128xf32>
    %186 = arith.addf %185, %184 : vector<8x128xf32>
    %187 = arith.divf %185, %186 : vector<8x128xf32>
    %188 = arith.select %27, %182, %187 : vector<8x128xi1>, vector<8x128xf32>
    %189 = vector.extract_strided_slice %188 {offsets = [0, 0], sizes = [8, 32], strides = [1, 1]} : vector<8x128xf32> to vector<8x32xf32>
    %190 = vector.extract_strided_slice %188 {offsets = [0, 32], sizes = [8, 32], strides = [1, 1]} : vector<8x128xf32> to vector<8x32xf32>
    %191 = vector.extract_strided_slice %188 {offsets = [0, 64], sizes = [8, 32], strides = [1, 1]} : vector<8x128xf32> to vector<8x32xf32>
    %192 = vector.extract_strided_slice %188 {offsets = [0, 96], sizes = [8, 32], strides = [1, 1]} : vector<8x128xf32> to vector<8x32xf32>
    %193 = arith.mulf %190, %174 : vector<8x32xf32>
    %194 = arith.mulf %189, %191 : vector<8x32xf32>
    %195 = arith.addf %193, %194 : vector<8x32xf32>
    %196 = math.tanh %195 : vector<8x32xf32>
    %197 = arith.mulf %192, %196 : vector<8x32xf32>
    %198 = vector.shape_cast %50 : vector<8x32xf32> to vector<1x8x32xf32>
    %199 = vector.shape_cast %71 : vector<8x32xf32> to vector<1x8x32xf32>
    %200 = vector.shape_cast %92 : vector<8x32xf32> to vector<1x8x32xf32>
    %201 = vector.shape_cast %113 : vector<8x32xf32> to vector<1x8x32xf32>
    %202 = vector.shape_cast %134 : vector<8x32xf32> to vector<1x8x32xf32>
    %203 = vector.shape_cast %155 : vector<8x32xf32> to vector<1x8x32xf32>
    %204 = vector.shape_cast %176 : vector<8x32xf32> to vector<1x8x32xf32>
    %205 = vector.shape_cast %197 : vector<8x32xf32> to vector<1x8x32xf32>
    %206 = tpu.concatenate %198, %199, %200, %201, %202, %203, %204, %205 in 0 : vector<1x8x32xf32>, vector<1x8x32xf32>, vector<1x8x32xf32>, vector<1x8x32xf32>, vector<1x8x32xf32>, vector<1x8x32xf32>, vector<1x8x32xf32>, vector<1x8x32xf32> -> vector<8x8x32xf32>
    %c0_35 = arith.constant 0 : index
    %c0_36 = arith.constant 0 : index
    %207 = vector.load %arg8[%c0_35, %c0_36] : memref<1x32xf32, #tpu.memory_space<vmem>>, vector<1x32xf32>
    %208 = vector.shape_cast %207 : vector<1x32xf32> to vector<1x1x32xf32>
    %209 = vector.broadcast %208 : vector<1x1x32xf32> to vector<8x8x32xf32>
    %210 = arith.mulf %206, %209 : vector<8x8x32xf32>
    %cst_37 = arith.constant dense<0.000000e+00> : vector<8x8xf32>
    %211 = vector.multi_reduction <add>, %210, %cst_37 [2] : vector<8x8x32xf32> to vector<8x8xf32>
    %212 = vector.shape_cast %211 : vector<8x8xf32> to vector<8x8x1xf32>
    %213 = math.tanh %212 : vector<8x8x1xf32>
    %cst_38 = arith.constant dense<0xFF800000> : vector<8x1xf32>
    %214 = vector.multi_reduction <maximumf>, %213, %cst_38 [0] : vector<8x8x1xf32> to vector<8x1xf32>
    %215 = vector.shape_cast %214 : vector<8x1xf32> to vector<1x8x1xf32>
    %216 = vector.broadcast %215 : vector<1x8x1xf32> to vector<8x8x1xf32>
    %217 = arith.subf %213, %216 : vector<8x8x1xf32>
    %218 = math.exp %217 : vector<8x8x1xf32>
    %cst_39 = arith.constant dense<0.000000e+00> : vector<8x1xf32>
    %219 = vector.multi_reduction <add>, %218, %cst_39 [0] : vector<8x8x1xf32> to vector<8x1xf32>
    %220 = vector.shape_cast %219 : vector<8x1xf32> to vector<1x8x1xf32>
    %221 = tpu.reciprocal %220 {approx = true} : vector<1x8x1xf32> -> vector<1x8x1xf32>
    %222 = vector.broadcast %221 : vector<1x8x1xf32> to vector<8x8x1xf32>
    %223 = arith.mulf %218, %222 : vector<8x8x1xf32>
    %224 = vector.broadcast %223 : vector<8x8x1xf32> to vector<8x8x32xf32>
    %225 = arith.mulf %224, %206 : vector<8x8x32xf32>
    %cst_40 = arith.constant dense<0.000000e+00> : vector<8x32xf32>
    %226 = vector.multi_reduction <add>, %225, %cst_40 [0] : vector<8x8x32xf32> to vector<8x32xf32>
    %c0_41 = arith.constant 0 : index
    %c0_42 = arith.constant 0 : index
    %227 = vector.load %arg9[%c0_41, %c0_42] : memref<8x32xf32, #tpu.memory_space<vmem>>, vector<8x32xf32>
    tpu.vector_store %arg9[%c0_41, %c0_42], %226 {strides = array<i32>} : memref<8x32xf32, #tpu.memory_space<vmem>>, vector<8x32xf32>,
    return
  }
}

</mosaic_0001>

<llo_original>
// kernel: ts_feature_extractor_forward.1
$region0: #{ts_feature_extractor_forward.1}
  #allocation0 [shape = 'u32[]', space=smem, size = 0x4, offset = 0x4, fixed_abs, tag = 'smem constant byte address 0x4 - core index']
  #allocation1 [shape = 'u32[72,128]{1,0:T(1,128)}', space=vmem, size = 0x9000, scoped, tag = 'internal scratch']
  %s0 = inlined_call_operand.vmem [shape: f32[64,17], index: 0, kind: input, shape index: {}]
  %s1 = inlined_call_operand.vmem [shape: f32[8,5], index: 1, kind: input, shape index: {}]
  %s2 = inlined_call_operand.vmem [shape: f32[5,6], index: 2, kind: input, shape index: {}]
  %s3 = inlined_call_operand.vmem [shape: f32[1,6], index: 3, kind: input, shape index: {}]
  %s4 = inlined_call_operand.vmem [shape: f32[17,128], index: 4, kind: input, shape index: {}]
  %s5 = inlined_call_operand.vmem [shape: f32[6,128], index: 5, kind: input, shape index: {}]
  %s6 = inlined_call_operand.vmem [shape: f32[32,128], index: 6, kind: input, shape index: {}]
  %s7 = inlined_call_operand.vmem [shape: f32[1,128], index: 7, kind: input, shape index: {}]
  %s8 = inlined_call_operand.vmem [shape: f32[1,32], index: 8, kind: input, shape index: {}]
  %s9 = inlined_call_operand.vmem [shape: f32[8,32], index: 9, kind: output, shape index: {}]
  %s10 = sld [smem:[#allocation0]]
  $region46: #{ts_feature_extractor_forward.1} parent=0
    _
  %s12 = ssub.s32 1, %s10
  %s13 = scalar_select 0, %s12, %s10
  // Predicated region
  $region2: #{ts_feature_extractor_forward.1} parent=0 // pred_check
    _
  $region3: #{ts_feature_extractor_forward.1} parent=0 // pred_check_branch
    %15 = sbr.rel (0) target = $region5
  $region4: #{ts_feature_extractor_forward.1} parent=0 // pred_region
    _
  $region5: #{ts_feature_extractor_forward.1} parent=0 // pred_fallthru
    _
  // Predicated region
  $region6: #{ts_feature_extractor_forward.1} parent=0 // pred_check
    _
  $region7: #{ts_feature_extractor_forward.1} parent=0 // pred_check_branch
    %17 = sbr.rel (0) target = $region9
  $region8: #{ts_feature_extractor_forward.1} parent=0 // pred_region
    _
  $region9: #{ts_feature_extractor_forward.1} parent=0 // pred_fallthru
    _
  // Predicated region
  $region10: #{ts_feature_extractor_forward.1} parent=0 // pred_check
    _
  $region11: #{ts_feature_extractor_forward.1} parent=0 // pred_check_branch
    %19 = sbr.rel (0) target = $region13
  $region12: #{ts_feature_extractor_forward.1} parent=0 // pred_region
    _
  $region13: #{ts_feature_extractor_forward.1} parent=0 // pred_fallthru
    _
  // Predicated region
  $region14: #{ts_feature_extractor_forward.1} parent=0 // pred_check
    _
  $region15: #{ts_feature_extractor_forward.1} parent=0 // pred_check_branch
    %21 = sbr.rel (0) target = $region17
  $region16: #{ts_feature_extractor_forward.1} parent=0 // pred_region
    _
  $region17: #{ts_feature_extractor_forward.1} parent=0 // pred_fallthru
    _
  // Predicated region
  $region18: #{ts_feature_extractor_forward.1} parent=0 // pred_check
    _
  $region19: #{ts_feature_extractor_forward.1} parent=0 // pred_check_branch
    %23 = sbr.rel (0) target = $region21
  $region20: #{ts_feature_extractor_forward.1} parent=0 // pred_region
    _
  $region21: #{ts_feature_extractor_forward.1} parent=0 // pred_fallthru
    _
  // Predicated region
  $region22: #{ts_feature_extractor_forward.1} parent=0 // pred_check
    _
  $region23: #{ts_feature_extractor_forward.1} parent=0 // pred_check_branch
    %25 = sbr.rel (0) target = $region25
  $region24: #{ts_feature_extractor_forward.1} parent=0 // pred_region
    _
  $region25: #{ts_feature_extractor_forward.1} parent=0 // pred_fallthru
    _
  // Predicated region
  $region26: #{ts_feature_extractor_forward.1} parent=0 // pred_check
    _
  $region27: #{ts_feature_extractor_forward.1} parent=0 // pred_check_branch
    %27 = sbr.rel (0) target = $region29
  $region28: #{ts_feature_extractor_forward.1} parent=0 // pred_region
    _
  $region29: #{ts_feature_extractor_forward.1} parent=0 // pred_fallthru
    _
  // Predicated region
  $region30: #{ts_feature_extractor_forward.1} parent=0 // pred_check
    _
  $region31: #{ts_feature_extractor_forward.1} parent=0 // pred_check_branch
    %29 = sbr.rel (0) target = $region33
  $region32: #{ts_feature_extractor_forward.1} parent=0 // pred_region
    _
  $region33: #{ts_feature_extractor_forward.1} parent=0 // pred_fallthru
    _
  // Predicated region
  $region34: #{ts_feature_extractor_forward.1} parent=0 // pred_check
    _
  $region35: #{ts_feature_extractor_forward.1} parent=0 // pred_check_branch
    %31 = sbr.rel (0) target = $region37
  $region36: #{ts_feature_extractor_forward.1} parent=0 // pred_region
    _
  $region37: #{ts_feature_extractor_forward.1} parent=0 // pred_fallthru
    _
  %v33 = vld [vmem:[%s1] sm:$0xff]
  %v34 = vld [vmem:[%s2] sm:$0x1f]
  %v35 = vld [vmem:[%s3] sm:$0x1]
  %v37 = vperm.slane %v35, 0
  %vm39 = vcmask 39936
  %v41 = vsel %vm39, %v33, 0
  %vm43 = vcmask 1044480
  %v45 = vsel %vm43, %v34, 0
  %47 = vmatpush.msra.mxu0 0.0
  %48 = vmatpush.msra.mxu0 0.0
  %49 = vmatpush.msra.mxu0 0.0
  %50 = vmatpush.msra.mxu0 0.0
  %51 = vmatpush.msra.mxu0 0.0
  %52 = vmatpush.msra.mxu0 0.0
  %53 = vmatpush.msra.mxu0 0.0
  %54 = vmatpush.msra.mxu0 0.0
  %55 = vmatpush.msra.mxu0 0.0
  %56 = vmatpush.msra.mxu0 0.0
  %57 = vmatpush.msra.mxu0 0.0
  %58 = vmatpush.msra.mxu0 0.0
  %59 = vmatpush.msra.mxu0 0.0
  %60 = vmatpush.msra.mxu0 0.0
  %61 = vmatpush.msra.mxu0 0.0
  %62 = vmatpush.msra.mxu0 %v45
  %63 = vmatmul.f32.gmra.mxu0 %v41
  %v64 = vpop.f32.mrf.mxu0
  %v65 = vadd.f32 %v37, %v64
  %66 = vdwg.mxu0
  %v67 = vld [vmem:[%s5] sm:$0x3f]
  %v68 = vld [vmem:[%s7] sm:$0x1]
  %v70 = vperm.slane %v68, 0
  %vm72 = vcmask 48128
  %v74 = vsel %vm72, %v65, 0
  %vm76 = vcmask 1045504
  %v78 = vsel %vm76, %v67, 0
  %80 = vmatpush.msra.mxu0 0.0
  %81 = vmatpush.msra.mxu0 0.0
  %82 = vmatpush.msra.mxu0 0.0
  %83 = vmatpush.msra.mxu0 0.0
  %84 = vmatpush.msra.mxu0 0.0
  %85 = vmatpush.msra.mxu0 0.0
  %86 = vmatpush.msra.mxu0 0.0
  %87 = vmatpush.msra.mxu0 0.0
  %88 = vmatpush.msra.mxu0 0.0
  %89 = vmatpush.msra.mxu0 0.0
  %90 = vmatpush.msra.mxu0 0.0
  %91 = vmatpush.msra.mxu0 0.0
  %92 = vmatpush.msra.mxu0 0.0
  %93 = vmatpush.msra.mxu0 0.0
  %94 = vmatpush.msra.mxu0 0.0
  %95 = vmatpush.msra.mxu0 %v78
  %96 = vmatmul.f32.gmra.mxu0 %v74
  %v97 = vpop.f32.mrf.mxu0
  %v98 = vadd.f32 %v70, %v97
  %99 = vdwg.mxu0
  %v100 = vld [vmem:[%s0] sm:$0xff]
  %v101 = vld [vmem:[%s0 + $0x8] sm:$0xff]
  %v102 = vld [vmem:[%s0 + $0x10] sm:$0xff]
  %v103 = vld [vmem:[%s0 + $0x18] sm:$0xff]
  %v104 = vld [vmem:[%s0 + $0x20] sm:$0xff]
  %v105 = vld [vmem:[%s0 + $0x28] sm:$0xff]
  %v106 = vld [vmem:[%s0 + $0x30] sm:$0xff]
  %v107 = vld [vmem:[%s0 + $0x38] sm:$0xff]
  %v108 = vpack.c.bf16 %v101, %v100
  %v109 = vpack.c.bf16 %v103, %v102
  %v110 = vpack.c.bf16 %v105, %v104
  %v111 = vpack.c.bf16 %v107, %v106
  %v112 = vld [vmem:[%s4] sm:$0xff]
  %v113 = vld [vmem:[%s4 + $0x8] sm:$0xff]
  %v114 = vld [vmem:[%s4 + $0x10] sm:$0x1]
  %v115 = vpack.c.bf16 %v113, %v112
  %v116 = vpack.c.bf16 %v114, %v114
  %vm117 = vcmask 138240
  %v119 = vsel %vm117, %v108, 0
  %v122 = vsel %vm117, %v109, 0
  %v125 = vsel %vm117, %v110, 0
  %v128 = vsel %vm117, %v111, 0
  %vm130 = vcmask 1040384
  %v131 = vsel 0, 4294967295, 65535
  %v132 = vsel %vm130, %v131, 0
  %v134 = vand.u32 %v116, %v132
  %136 = vmatpush.bf16.msra.mxu0 0
  %137 = vmatpush.bf16.msra.mxu0 0
  %138 = vmatpush.bf16.msra.mxu0 0
  %139 = vmatpush.bf16.msra.mxu0 0
  %140 = vmatpush.bf16.msra.mxu0 0
  %141 = vmatpush.bf16.msra.mxu0 0
  %142 = vmatpush.bf16.msra.mxu0 %v134
  %143 = vmatpush.bf16.msra.mxu0 %v115
  %144 = vmatmul.bf16.gmra.mxu0 %v119
  %v145 = vpop.f32.mrf.mxu0
  %v146 = vadd.f32 0.0, %v145
  %v147 = vpop.f32.mrf.mxu0
  %v148 = vadd.f32 0.0, %v147
  %149 = vmatmul.bf16.gmra.mxu0 %v122
  %v150 = vpop.f32.mrf.mxu0
  %v151 = vadd.f32 0.0, %v150
  %v152 = vpop.f32.mrf.mxu0
  %v153 = vadd.f32 0.0, %v152
  %154 = vmatmul.bf16.gmra.mxu0 %v125
  %v155 = vpop.f32.mrf.mxu0
  %v156 = vadd.f32 0.0, %v155
  %v157 = vpop.f32.mrf.mxu0
  %v158 = vadd.f32 0.0, %v157
  %159 = vmatmul.bf16.gmra.mxu0 %v128
  %v160 = vpop.f32.mrf.mxu0
  %v161 = vadd.f32 0.0, %v160
  %v162 = vpop.f32.mrf.mxu0
  %v163 = vadd.f32 0.0, %v162
  %164 = vdwg.mxu0
  %v165 = vadd.f32 %v146, %v98
  %v166 = vadd.f32 %v148, %v98
  %v167 = vadd.f32 %v151, %v98
  %v168 = vadd.f32 %v153, %v98
  %v169 = vadd.f32 %v156, %v98
  %v170 = vadd.f32 %v158, %v98
  %v171 = vadd.f32 %v161, %v98
  %v172 = vadd.f32 %v163, %v98
  %v173 = vld [vmem:[%s6] sm:$0xff]
  %v174 = vld [vmem:[%s6 + $0x8] sm:$0xff]
  %v175 = vld [vmem:[%s6 + $0x10] sm:$0xff]
  %v176 = vld [vmem:[%s6 + $0x18] sm:$0xff]
  %v177 = vpack.c.bf16 %v174, %v173
  %v178 = vpack.c.bf16 %v176, %v175
  %v179 = vlaneseq
  %v180 = vand.u32 %v179, 127
  %vm181 = vcmp.ge.s32.totalorder %v180, 64
  %vm182 = vcmp.lt.s32.totalorder %v180, 96
  %vm183 = vmand %vm181, %vm182
  %vm184 = vcmask 261120
  %v186 = vsel %vm184, 0, 0
  %188 = vmatpush.bf16.msra.mxu0 0
  %189 = vmatpush.bf16.msra.mxu0 0
  %190 = vmatpush.bf16.msra.mxu0 0
  %191 = vmatpush.bf16.msra.mxu0 0
  %192 = vmatpush.bf16.msra.mxu0 0
  %193 = vmatpush.bf16.msra.mxu0 0
  %194 = vmatpush.bf16.msra.mxu0 %v178
  %195 = vmatpush.bf16.msra.mxu0 %v177
  %196 = vmatmul.bf16.gmra.mxu0 %v186
  %v197 = vpop.f32.mrf.mxu0
  %v198 = vadd.f32 0.0, %v197
  %v199 = vpop.f32.mrf.mxu0
  %200 = vdwg.mxu0
  %v201 = vadd.f32 %v165, %v198
  %v202 = vtanh.pop %v201
  %v203 = vxor.u32 %v201, 2147483648
  %v204 = vmul.f32 %v203, 1.442695
  %v205 = vpow.pop %v204
  %v206 = vadd.f32 %v205, 1.0
  %v207 = vrcp.pop %v206
  %v208 = vmul.f32 %v206, %v207
  %v209 = vsub.f32 1.0, %v208
  %v210 = vmul.f32 %v207, %v209
  %v211 = vadd.f32 %v207, %v210
  %vm212 = vweird.f32 %v206
  %vm213 = vweird.f32 %v207
  %vm214 = vmor %vm212, %vm213
  %v215 = vsel %vm214, %v207, %v211
  %v216 = vand.u32 2147483647, %v206
  %vm217 = vcmp.eq.f32.partialorder %v216, 8.507059e+37
  %v218 = vand.u32 %v206, 2147483648
  %v219 = vor.u32 1.1754944e-38, %v218
  %v220 = vsel %vm217, %v219, %v215
  %v221 = vmul.f32 1.0, %v220
  %v222 = vsel %vm183, %v202, %v221
  %v223 = vmul.f32 %v222, 0.0
  %225 = vrot.lane.b32.xlu0 %v222, 64
  %v226 = vpop.permute.xlu0 %225
  %v228 = vmul.f32 %v222, %v226
  %230 = vrot.lane.b32.xlu0 %v228, 32
  %v231 = vpop.permute.xlu0 %230
  %v233 = vadd.f32 %v223, %v231
  %v234 = vtanh.pop %v233
  %236 = vrot.lane.b32.xlu0 %v234, 64
  %v237 = vpop.permute.xlu0 %236
  %v239 = vmul.f32 %v222, %v237
  %v240 = vpack.c.bf16 %v239, %v239
  %242 = vrot.lane.b32.xlu0 %v240, 32
  %v243 = vpop.permute.xlu0 %242
  %v245 = vsel %vm184, %v243, 0
  %247 = vmatpush.bf16.msra.mxu0 0
  %248 = vmatpush.bf16.msra.mxu0 0
  %249 = vmatpush.bf16.msra.mxu0 0
  %250 = vmatpush.bf16.msra.mxu0 0
  %251 = vmatpush.bf16.msra.mxu0 0
  %252 = vmatpush.bf16.msra.mxu0 0
  %253 = vmatpush.bf16.msra.mxu0 %v178
  %254 = vmatpush.bf16.msra.mxu0 %v177
  %255 = vmatmul.bf16.gmra.mxu0 %v245
  %v256 = vpop.f32.mrf.mxu0
  %v257 = vadd.f32 0.0, %v256
  %v258 = vpop.f32.mrf.mxu0
  %259 = vdwg.mxu0
  %v260 = vadd.f32 %v166, %v257
  %v261 = vtanh.pop %v260
  %v262 = vxor.u32 %v260, 2147483648
  %v263 = vmul.f32 %v262, 1.442695
  %v264 = vpow.pop %v263
  %v265 = vadd.f32 %v264, 1.0
  %v266 = vrcp.pop %v265
  %v267 = vmul.f32 %v265, %v266
  %v268 = vsub.f32 1.0, %v267
  %v269 = vmul.f32 %v266, %v268
  %v270 = vadd.f32 %v266, %v269
  %vm271 = vweird.f32 %v265
  %vm272 = vweird.f32 %v266
  %vm273 = vmor %vm271, %vm272
  %v274 = vsel %vm273, %v266, %v270
  %v275 = vand.u32 2147483647, %v265
  %vm276 = vcmp.eq.f32.partialorder %v275, 8.507059e+37
  %v277 = vand.u32 %v265, 2147483648
  %v278 = vor.u32 1.1754944e-38, %v277
  %v279 = vsel %vm276, %v278, %v274
  %v280 = vmul.f32 1.0, %v279
  %v281 = vsel %vm183, %v261, %v280
  %v282 = vmul.f32 %v281, %v233
  %284 = vrot.lane.b32.xlu0 %v281, 64
  %v285 = vpop.permute.xlu0 %284
  %v287 = vmul.f32 %v281, %v285
  %289 = vrot.lane.b32.xlu0 %v287, 32
  %v290 = vpop.permute.xlu0 %289
  %v292 = vadd.f32 %v282, %v290
  %v293 = vtanh.pop %v292
  %295 = vrot.lane.b32.xlu0 %v293, 64
  %v296 = vpop.permute.xlu0 %295
  %v298 = vmul.f32 %v281, %v296
  %v299 = vpack.c.bf16 %v298, %v298
  %301 = vrot.lane.b32.xlu0 %v299, 32
  %v302 = vpop.permute.xlu0 %301
  %v304 = vsel %vm184, %v302, 0
  %306 = vmatpush.bf16.msra.mxu0 0
  %307 = vmatpush.bf16.msra.mxu0 0
  %308 = vmatpush.bf16.msra.mxu0 0
  %309 = vmatpush.bf16.msra.mxu0 0
  %310 = vmatpush.bf16.msra.mxu0 0
  %311 = vmatpush.bf16.msra.mxu0 0
  %312 = vmatpush.bf16.msra.mxu0 %v178
  %313 = vmatpush.bf16.msra.mxu0 %v177
  %314 = vmatmul.bf16.gmra.mxu0 %v304
  %v315 = vpop.f32.mrf.mxu0
  %v316 = vadd.f32 0.0, %v315
  %v317 = vpop.f32.mrf.mxu0
  %318 = vdwg.mxu0
  %v319 = vadd.f32 %v167, %v316
  %v320 = vtanh.pop %v319
  %v321 = vxor.u32 %v319, 2147483648
  %v322 = vmul.f32 %v321, 1.442695
  %v323 = vpow.pop %v322
  %v324 = vadd.f32 %v323, 1.0
  %v325 = vrcp.pop %v324
  %v326 = vmul.f32 %v324, %v325
  %v327 = vsub.f32 1.0, %v326
  %v328 = vmul.f32 %v325, %v327
  %v329 = vadd.f32 %v325, %v328
  %vm330 = vweird.f32 %v324
  %vm331 = vweird.f32 %v325
  %vm332 = vmor %vm330, %vm331
  %v333 = vsel %vm332, %v325, %v329
  %v334 = vand.u32 2147483647, %v324
  %vm335 = vcmp.eq.f32.partialorder %v334, 8.507059e+37
  %v336 = vand.u32 %v324, 2147483648
  %v337 = vor.u32 1.1754944e-38, %v336
  %v338 = vsel %vm335, %v337, %v333
  %v339 = vmul.f32 1.0, %v338
  %v340 = vsel %vm183, %v320, %v339
  %v341 = vmul.f32 %v340, %v292
  %343 = vrot.lane.b32.xlu0 %v340, 64
  %v344 = vpop.permute.xlu0 %343
  %v346 = vmul.f32 %v340, %v344
  %348 = vrot.lane.b32.xlu0 %v346, 32
  %v349 = vpop.permute.xlu0 %348
  %v351 = vadd.f32 %v341, %v349
  %v352 = vtanh.pop %v351
  %354 = vrot.lane.b32.xlu0 %v352, 64
  %v355 = vpop.permute.xlu0 %354
  %v357 = vmul.f32 %v340, %v355
  %v358 = vpack.c.bf16 %v357, %v357
  %360 = vrot.lane.b32.xlu0 %v358, 32
  %v361 = vpop.permute.xlu0 %360
  %v363 = vsel %vm184, %v361, 0
  %365 = vmatpush.bf16.msra.mxu0 0
  %366 = vmatpush.bf16.msra.mxu0 0
  %367 = vmatpush.bf16.msra.mxu0 0
  %368 = vmatpush.bf16.msra.mxu0 0
  %369 = vmatpush.bf16.msra.mxu0 0
  %370 = vmatpush.bf16.msra.mxu0 0
  %371 = vmatpush.bf16.msra.mxu0 %v178
  %372 = vmatpush.bf16.msra.mxu0 %v177
  %373 = vmatmul.bf16.gmra.mxu0 %v363
  %v374 = vpop.f32.mrf.mxu0
  %v375 = vadd.f32 0.0, %v374
  %v376 = vpop.f32.mrf.mxu0
  %377 = vdwg.mxu0
  %v378 = vadd.f32 %v168, %v375
  %v379 = vtanh.pop %v378
  %v380 = vxor.u32 %v378, 2147483648
  %v381 = vmul.f32 %v380, 1.442695
  %v382 = vpow.pop %v381
  %v383 = vadd.f32 %v382, 1.0
  %v384 = vrcp.pop %v383
  %v385 = vmul.f32 %v383, %v384
  %v386 = vsub.f32 1.0, %v385
  %v387 = vmul.f32 %v384, %v386
  %v388 = vadd.f32 %v384, %v387
  %vm389 = vweird.f32 %v383
  %vm390 = vweird.f32 %v384
  %vm391 = vmor %vm389, %vm390
  %v392 = vsel %vm391, %v384, %v388
  %v393 = vand.u32 2147483647, %v383
  %vm394 = vcmp.eq.f32.partialorder %v393, 8.507059e+37
  %v395 = vand.u32 %v383, 2147483648
  %v396 = vor.u32 1.1754944e-38, %v395
  %v397 = vsel %vm394, %v396, %v392
  %v398 = vmul.f32 1.0, %v397
  %v399 = vsel %vm183, %v379, %v398
  %v400 = vmul.f32 %v399, %v351
  %402 = vrot.lane.b32.xlu0 %v399, 64
  %v403 = vpop.permute.xlu0 %402
  %v405 = vmul.f32 %v399, %v403
  %407 = vrot.lane.b32.xlu0 %v405, 32
  %v408 = vpop.permute.xlu0 %407
  %v410 = vadd.f32 %v400, %v408
  %v411 = vtanh.pop %v410
  %413 = vrot.lane.b32.xlu0 %v411, 64
  %v414 = vpop.permute.xlu0 %413
  %v416 = vmul.f32 %v399, %v414
  %v417 = vpack.c.bf16 %v416, %v416
  %419 = vrot.lane.b32.xlu0 %v417, 32
  %v420 = vpop.permute.xlu0 %419
  %v422 = vsel %vm184, %v420, 0
  %424 = vmatpush.bf16.msra.mxu0 0
  %425 = vmatpush.bf16.msra.mxu0 0
  %426 = vmatpush.bf16.msra.mxu0 0
  %427 = vmatpush.bf16.msra.mxu0 0
  %428 = vmatpush.bf16.msra.mxu0 0
  %429 = vmatpush.bf16.msra.mxu0 0
  %430 = vmatpush.bf16.msra.mxu0 %v178
  %431 = vmatpush.bf16.msra.mxu0 %v177
  %432 = vmatmul.bf16.gmra.mxu0 %v422
  %v433 = vpop.f32.mrf.mxu0
  %v434 = vadd.f32 0.0, %v433
  %v435 = vpop.f32.mrf.mxu0
  %436 = vdwg.mxu0
  %v437 = vadd.f32 %v169, %v434
  %v438 = vtanh.pop %v437
  %v439 = vxor.u32 %v437, 2147483648
  %v440 = vmul.f32 %v439, 1.442695
  %v441 = vpow.pop %v440
  %v442 = vadd.f32 %v441, 1.0
  %v443 = vrcp.pop %v442
  %v444 = vmul.f32 %v442, %v443
  %v445 = vsub.f32 1.0, %v444
  %v446 = vmul.f32 %v443, %v445
  %v447 = vadd.f32 %v443, %v446
  %vm448 = vweird.f32 %v442
  %vm449 = vweird.f32 %v443
  %vm450 = vmor %vm448, %vm449
  %v451 = vsel %vm450, %v443, %v447
  %v452 = vand.u32 2147483647, %v442
  %vm453 = vcmp.eq.f32.partialorder %v452, 8.507059e+37
  %v454 = vand.u32 %v442, 2147483648
  %v455 = vor.u32 1.1754944e-38, %v454
  %v456 = vsel %vm453, %v455, %v451
  %v457 = vmul.f32 1.0, %v456
  %v458 = vsel %vm183, %v438, %v457
  %v459 = vmul.f32 %v458, %v410
  %461 = vrot.lane.b32.xlu0 %v458, 64
  %v462 = vpop.permute.xlu0 %461
  %v464 = vmul.f32 %v458, %v462
  %466 = vrot.lane.b32.xlu0 %v464, 32
  %v467 = vpop.permute.xlu0 %466
  %v469 = vadd.f32 %v459, %v467
  %v470 = vtanh.pop %v469
  %472 = vrot.lane.b32.xlu0 %v470, 64
  %v473 = vpop.permute.xlu0 %472
  %v475 = vmul.f32 %v458, %v473
  %v476 = vpack.c.bf16 %v475, %v475
  %478 = vrot.lane.b32.xlu0 %v476, 32
  %v479 = vpop.permute.xlu0 %478
  %v481 = vsel %vm184, %v479, 0
  %483 = vmatpush.bf16.msra.mxu0 0
  %484 = vmatpush.bf16.msra.mxu0 0
  %485 = vmatpush.bf16.msra.mxu0 0
  %486 = vmatpush.bf16.msra.mxu0 0
  %487 = vmatpush.bf16.msra.mxu0 0
  %488 = vmatpush.bf16.msra.mxu0 0
  %489 = vmatpush.bf16.msra.mxu0 %v178
  %490 = vmatpush.bf16.msra.mxu0 %v177
  %491 = vmatmul.bf16.gmra.mxu0 %v481
  %v492 = vpop.f32.mrf.mxu0
  %v493 = vadd.f32 0.0, %v492
  %v494 = vpop.f32.mrf.mxu0
  %495 = vdwg.mxu0
  %v496 = vadd.f32 %v170, %v493
  %v497 = vtanh.pop %v496
  %v498 = vxor.u32 %v496, 2147483648
  %v499 = vmul.f32 %v498, 1.442695
  %v500 = vpow.pop %v499
  %v501 = vadd.f32 %v500, 1.0
  %v502 = vrcp.pop %v501
  %v503 = vmul.f32 %v501, %v502
  %v504 = vsub.f32 1.0, %v503
  %v505 = vmul.f32 %v502, %v504
  %v506 = vadd.f32 %v502, %v505
  %vm507 = vweird.f32 %v501
  %vm508 = vweird.f32 %v502
  %vm509 = vmor %vm507, %vm508
  %v510 = vsel %vm509, %v502, %v506
  %v511 = vand.u32 2147483647, %v501
  %vm512 = vcmp.eq.f32.partialorder %v511, 8.507059e+37
  %v513 = vand.u32 %v501, 2147483648
  %v514 = vor.u32 1.1754944e-38, %v513
  %v515 = vsel %vm512, %v514, %v510
  %v516 = vmul.f32 1.0, %v515
  %v517 = vsel %vm183, %v497, %v516
  %v518 = vmul.f32 %v517, %v469
  %520 = vrot.lane.b32.xlu0 %v517, 64
  %v521 = vpop.permute.xlu0 %520
  %v523 = vmul.f32 %v517, %v521
  %525 = vrot.lane.b32.xlu0 %v523, 32
  %v526 = vpop.permute.xlu0 %525
  %v528 = vadd.f32 %v518, %v526
  %v529 = vtanh.pop %v528
  %531 = vrot.lane.b32.xlu0 %v529, 64
  %v532 = vpop.permute.xlu0 %531
  %v534 = vmul.f32 %v517, %v532
  %v535 = vpack.c.bf16 %v534, %v534
  %537 = vrot.lane.b32.xlu0 %v535, 32
  %v538 = vpop.permute.xlu0 %537
  %v540 = vsel %vm184, %v538, 0
  %542 = vmatpush.bf16.msra.mxu0 0
  %543 = vmatpush.bf16.msra.mxu0 0
  %544 = vmatpush.bf16.msra.mxu0 0
  %545 = vmatpush.bf16.msra.mxu0 0
  %546 = vmatpush.bf16.msra.mxu0 0
  %547 = vmatpush.bf16.msra.mxu0 0
  %548 = vmatpush.bf16.msra.mxu0 %v178
  %549 = vmatpush.bf16.msra.mxu0 %v177
  %550 = vmatmul.bf16.gmra.mxu0 %v540
  %v551 = vpop.f32.mrf.mxu0
  %v552 = vadd.f32 0.0, %v551
  %v553 = vpop.f32.mrf.mxu0
  %554 = vdwg.mxu0
  %v555 = vadd.f32 %v171, %v552
  %v556 = vtanh.pop %v555
  %v557 = vxor.u32 %v555, 2147483648
  %v558 = vmul.f32 %v557, 1.442695
  %v559 = vpow.pop %v558
  %v560 = vadd.f32 %v559, 1.0
  %v561 = vrcp.pop %v560
  %v562 = vmul.f32 %v560, %v561
  %v563 = vsub.f32 1.0, %v562
  %v564 = vmul.f32 %v561, %v563
  %v565 = vadd.f32 %v561, %v564
  %vm566 = vweird.f32 %v560
  %vm567 = vweird.f32 %v561
  %vm568 = vmor %vm566, %vm567
  %v569 = vsel %vm568, %v561, %v565
  %v570 = vand.u32 2147483647, %v560
  %vm571 = vcmp.eq.f32.partialorder %v570, 8.507059e+37
  %v572 = vand.u32 %v560, 2147483648
  %v573 = vor.u32 1.1754944e-38, %v572
  %v574 = vsel %vm571, %v573, %v569
  %v575 = vmul.f32 1.0, %v574
  %v576 = vsel %vm183, %v556, %v575
  %v577 = vmul.f32 %v576, %v528
  %579 = vrot.lane.b32.xlu0 %v576, 64
  %v580 = vpop.permute.xlu0 %579
  %v582 = vmul.f32 %v576, %v580
  %584 = vrot.lane.b32.xlu0 %v582, 32
  %v585 = vpop.permute.xlu0 %584
  %v587 = vadd.f32 %v577, %v585
  %v588 = vtanh.pop %v587
  %590 = vrot.lane.b32.xlu0 %v588, 64
  %v591 = vpop.permute.xlu0 %590
  %v593 = vmul.f32 %v576, %v591
  %v594 = vpack.c.bf16 %v593, %v593
  %596 = vrot.lane.b32.xlu0 %v594, 32
  %v597 = vpop.permute.xlu0 %596
  %v599 = vsel %vm184, %v597, 0
  %601 = vmatpush.bf16.msra.mxu0 0
  %602 = vmatpush.bf16.msra.mxu0 0
  %603 = vmatpush.bf16.msra.mxu0 0
  %604 = vmatpush.bf16.msra.mxu0 0
  %605 = vmatpush.bf16.msra.mxu0 0
  %606 = vmatpush.bf16.msra.mxu0 0
  %607 = vmatpush.bf16.msra.mxu0 %v178
  %608 = vmatpush.bf16.msra.mxu0 %v177
  %609 = vmatmul.bf16.gmra.mxu0 %v599
  %v610 = vpop.f32.mrf.mxu0
  %v611 = vadd.f32 0.0, %v610
  %v612 = vpop.f32.mrf.mxu0
  %613 = vdwg.mxu0
  %v614 = vadd.f32 %v172, %v611
  %v615 = vtanh.pop %v614
  %v616 = vxor.u32 %v614, 2147483648
  %v617 = vmul.f32 %v616, 1.442695
  %v618 = vpow.pop %v617
  %v619 = vadd.f32 %v618, 1.0
  %v620 = vrcp.pop %v619
  %v621 = vmul.f32 %v619, %v620
  %v622 = vsub.f32 1.0, %v621
  %v623 = vmul.f32 %v620, %v622
  %v624 = vadd.f32 %v620, %v623
  %vm625 = vweird.f32 %v619
  %vm626 = vweird.f32 %v620
  %vm627 = vmor %vm625, %vm626
  %v628 = vsel %vm627, %v620, %v624
  %v629 = vand.u32 2147483647, %v619
  %vm630 = vcmp.eq.f32.partialorder %v629, 8.507059e+37
  %v631 = vand.u32 %v619, 2147483648
  %v632 = vor.u32 1.1754944e-38, %v631
  %v633 = vsel %vm630, %v632, %v628
  %v634 = vmul.f32 1.0, %v633
  %v635 = vsel %vm183, %v615, %v634
  %v636 = vmul.f32 %v635, %v587
  %638 = vrot.lane.b32.xlu0 %v635, 64
  %v639 = vpop.permute.xlu0 %638
  %v641 = vmul.f32 %v635, %v639
  %643 = vrot.lane.b32.xlu0 %v641, 32
  %v644 = vpop.permute.xlu0 %643
  %v646 = vadd.f32 %v636, %v644
  %v647 = vtanh.pop %v646
  %649 = vrot.lane.b32.xlu0 %v647, 64
  %v650 = vpop.permute.xlu0 %649
  %v652 = vmul.f32 %v635, %v650
  %v653 = vld [vmem:[%s8] sm:$0x1]
  %v655 = vperm.slane %v653, 0
  %656 = vrot.lane.b32.xlu0 %v655, 96
  %v657 = vpop.permute.xlu0 %656
  %v659 = vmul.f32 %v239, %v657
  %v660 = vmul.f32 %v298, %v657
  %v661 = vmul.f32 %v357, %v657
  %v662 = vmul.f32 %v416, %v657
  %v663 = vmul.f32 %v475, %v657
  %v664 = vmul.f32 %v534, %v657
  %v665 = vmul.f32 %v593, %v657
  %v666 = vmul.f32 %v652, %v657
  %675 = vrot.lane.b32.xlu0 %v659, 32
  %v676 = vpop.permute.xlu0 %675
  %677 = vrot.lane.b32.xlu0 %v660, 32
  %v678 = vpop.permute.xlu0 %677
  %679 = vrot.lane.b32.xlu0 %v661, 32
  %v680 = vpop.permute.xlu0 %679
  %681 = vrot.lane.b32.xlu0 %v662, 32
  %v682 = vpop.permute.xlu0 %681
  %683 = vrot.lane.b32.xlu0 %v663, 32
  %v684 = vpop.permute.xlu0 %683
  %685 = vrot.lane.b32.xlu0 %v664, 32
  %v686 = vpop.permute.xlu0 %685
  %687 = vrot.lane.b32.xlu0 %v665, 32
  %v688 = vpop.permute.xlu0 %687
  %689 = vrot.lane.b32.xlu0 %v666, 32
  %v690 = vpop.permute.xlu0 %689
  %v699 = vsel %vm184, %v676, 0.0
  %700 = vadd.xlane.f32.xlu0 %v699
  %v701 = vpop.xlane.xlu0 %700
  %v702 = vsel %vm184, %v678, 0.0
  %703 = vadd.xlane.f32.xlu0 %v702
  %v704 = vpop.xlane.xlu0 %703
  %v705 = vsel %vm184, %v680, 0.0
  %706 = vadd.xlane.f32.xlu0 %v705
  %v707 = vpop.xlane.xlu0 %706
  %v708 = vsel %vm184, %v682, 0.0
  %709 = vadd.xlane.f32.xlu0 %v708
  %v710 = vpop.xlane.xlu0 %709
  %v711 = vsel %vm184, %v684, 0.0
  %712 = vadd.xlane.f32.xlu0 %v711
  %v713 = vpop.xlane.xlu0 %712
  %v714 = vsel %vm184, %v686, 0.0
  %715 = vadd.xlane.f32.xlu0 %v714
  %v716 = vpop.xlane.xlu0 %715
  %v717 = vsel %vm184, %v688, 0.0
  %718 = vadd.xlane.f32.xlu0 %v717
  %v719 = vpop.xlane.xlu0 %718
  %v720 = vsel %vm184, %v690, 0.0
  %721 = vadd.xlane.f32.xlu0 %v720
  %v722 = vpop.xlane.xlu0 %721
  %v723 = vtanh.pop %v701
  %v724 = vtanh.pop %v704
  %v725 = vtanh.pop %v707
  %v726 = vtanh.pop %v710
  %v727 = vtanh.pop %v713
  %v728 = vtanh.pop %v716
  %v729 = vtanh.pop %v719
  %v730 = vtanh.pop %v722
  %v731 = vmax.f32 %v723, %v727
  %v732 = vmax.f32 %v724, %v728
  %v733 = vmax.f32 %v725, %v729
  %v734 = vmax.f32 %v726, %v730
  %v735 = vmax.f32 %v731, %v732
  %v736 = vmax.f32 %v733, %v734
  %v737 = vmax.f32 %v735, %v736
  %v738 = vsub.f32 %v723, %v737
  %v739 = vsub.f32 %v724, %v737
  %v740 = vsub.f32 %v725, %v737
  %v741 = vsub.f32 %v726, %v737
  %v742 = vsub.f32 %v727, %v737
  %v743 = vsub.f32 %v728, %v737
  %v744 = vsub.f32 %v729, %v737
  %v745 = vsub.f32 %v730, %v737
  %v746 = vmul.f32 %v738, 1.442695
  %v747 = vpow.pop %v746
  %v748 = vmul.f32 %v739, 1.442695
  %v749 = vpow.pop %v748
  %v750 = vmul.f32 %v740, 1.442695
  %v751 = vpow.pop %v750
  %v752 = vmul.f32 %v741, 1.442695
  %v753 = vpow.pop %v752
  %v754 = vmul.f32 %v742, 1.442695
  %v755 = vpow.pop %v754
  %v756 = vmul.f32 %v743, 1.442695
  %v757 = vpow.pop %v756
  %v758 = vmul.f32 %v744, 1.442695
  %v759 = vpow.pop %v758
  %v760 = vmul.f32 %v745, 1.442695
  %v761 = vpow.pop %v760
  %v762 = vadd.f32 %v747, %v749
  %v763 = vadd.f32 %v762, %v751
  %v764 = vadd.f32 %v763, %v753
  %v765 = vadd.f32 %v764, %v755
  %v766 = vadd.f32 %v765, %v757
  %v767 = vadd.f32 %v766, %v759
  %v768 = vadd.f32 %v767, %v761
  %v769 = vrcp.pop %v768
  %v770 = vmul.f32 %v747, %v769
  %v771 = vmul.f32 %v749, %v769
  %v772 = vmul.f32 %v751, %v769
  %v773 = vmul.f32 %v753, %v769
  %v774 = vmul.f32 %v755, %v769
  %v775 = vmul.f32 %v757, %v769
  %v776 = vmul.f32 %v759, %v769
  %v777 = vmul.f32 %v761, %v769
  %v778 = vmul.f32 %v770, %v239
  %v779 = vmul.f32 %v771, %v298
  %v780 = vmul.f32 %v772, %v357
  %v781 = vmul.f32 %v773, %v416
  %v782 = vmul.f32 %v774, %v475
  %v783 = vmul.f32 %v775, %v534
  %v784 = vmul.f32 %v776, %v593
  %v785 = vmul.f32 %v777, %v652
  %vm786 = vcmask 1048320
  %v787 = vsel %vm786, %v778, 0.0
  %v788 = vsel %vm786, %v779, 0.0
  %v789 = vadd.f32 %v787, %v788
  %v790 = vsel %vm786, %v780, 0.0
  %v791 = vadd.f32 %v789, %v790
  %v792 = vsel %vm786, %v781, 0.0
  %v793 = vadd.f32 %v791, %v792
  %v794 = vsel %vm786, %v782, 0.0
  %v795 = vadd.f32 %v793, %v794
  %v796 = vsel %vm786, %v783, 0.0
  %v797 = vadd.f32 %v795, %v796
  %v798 = vsel %vm786, %v784, 0.0
  %v799 = vadd.f32 %v797, %v798
  %v800 = vsel %vm786, %v785, 0.0
  %v801 = vadd.f32 %v799, %v800
  %803 = vrot.lane.b32.xlu0 %v801, 32
  %v804 = vpop.permute.xlu0 %803
  %806 = vst.msk [vmem:[%s9] sm:$0xff] %vm184, %v804
  // Predicated region
  $region38: #{ts_feature_extractor_forward.1} parent=0 // pred_check
    _
  $region39: #{ts_feature_extractor_forward.1} parent=0 // pred_check_branch
    %808 = sbr.rel (0) target = $region41
  $region40: #{ts_feature_extractor_forward.1} parent=0 // pred_region
    _
  $region41: #{ts_feature_extractor_forward.1} parent=0 // pred_fallthru
    _
  // Predicated region
  $region42: #{ts_feature_extractor_forward.1} parent=0 // pred_check
    _
  $region43: #{ts_feature_extractor_forward.1} parent=0 // pred_check_branch
    %810 = sbr.rel (0) target = $region45
  $region44: #{ts_feature_extractor_forward.1} parent=0 // pred_region
    _
  $region45: #{ts_feature_extractor_forward.1} parent=0 // pred_fallthru
    _

</llo_original>
